<compile_context>
chip_gen: v7x
topology: tpu7x:2x2x1
jax: 0.10.0
libtpu: 0.0.40
codegen_flags: <defaults>
</compile_context>

<pallas_src>
import functools

import jax
import jax.numpy as jnp
from jax.experimental import pallas as pl
from jax.experimental.pallas import tpu as pltpu

LANE = 128  # TPU lane width; hidden layer widths are zero-padded to this inside the slabs.


def _mlp_kernel(x_ref, w_ref, b_ref, o_ref, *, d_in, d_out):
    """Fused Linear->ReLU x3 -> Linear over one batch tile (all f32: MXU matmul, VPU ReLU).

    x_ref: (TB, d_in)      f32  unpadded input tile
    w_ref: (L, 128, 128)   f32  zero-padded weights (W = W_torch.T), VMEM-resident
    b_ref: (L, 128)        f32  zero-padded biases,                  VMEM-resident
    o_ref: (TB, d_out)     f32  unpadded output tile
    """
    n_layers = w_ref.shape[0]

    # Layer 0: contract only against the real d_in rows of the padded weight slab.
    h = (jnp.dot(x_ref[...], w_ref[0][:d_in, :], preferred_element_type=jnp.float32)
         + b_ref[0:1, :])

    # Layers 1..L-1: ReLU then Linear.  Zero-padded weight rows/columns and zero bias lanes
    # keep the padded lanes of h at exactly 0 through every layer, so no masking is needed.
    for i in range(1, n_layers):
        h = jnp.maximum(h, 0.0)                                   # ReLU on the VPU
        h = (jnp.dot(h, w_ref[i], preferred_element_type=jnp.float32)
             + b_ref[i:i + 1, :])

    # Only the real output lanes are written back (masked lane store; 8x less write traffic
    # than storing the 128-wide padded activation).
    o_ref[...] = h[:, :d_out]


def _round_up(n, m):
    return ((n + m - 1) // m) * m


def _pick_batch_tile(B):
    """Batch tile: exact single block for small/medium B (block dims == array dims are
    always layout-legal, zero padding rows); big multiple-of-8 tiles for large B so the
    ~0.35 us per-grid-step overhead is amortized.  Even TB=2048 keeps the double-buffered
    in+out tiles well under 1 MiB -> safe for v5e's 16 MiB scoped-VMEM default too."""
    if B <= 1024:
        return B
    return 2048 if B >= 4096 else 1024


def pack_params(params):
    """Pack [(W (d_in,d_out), b (d_out,)), ...] (f32, W = W_torch.T) into padded slabs.

    Returns:
      w_slab: (L, 128, 128) f32, zero-padded
      b_slab: (L, 128)      f32, zero-padded
      d_out : true output width of the last layer
    """
    L = len(params)
    w_slab = jnp.zeros((L, LANE, LANE), dtype=jnp.float32)
    b_slab = jnp.zeros((L, LANE), dtype=jnp.float32)
    for i, (w, b) in enumerate(params):
        d_in, d_out = w.shape
        assert d_in <= LANE and d_out <= LANE, "layer widths must be <= 128 for this packing"
        w_slab = w_slab.at[i, :d_in, :d_out].set(w.astype(jnp.float32))
        b_slab = b_slab.at[i, :d_out].set(b.astype(jnp.float32))
    return w_slab, b_slab, params[-1][0].shape[1]


@functools.partial(jax.jit, static_argnames=("d_out",))
def net_forward(x, w_slab, b_slab, d_out):
    """x: (B, D_in) f32 -> (B, d_out) f32, matching Net.forward (all-f32 numerics)."""
    B, d_in = x.shape
    n_layers = w_slab.shape[0]
    assert d_in <= LANE and d_out <= LANE

    TB = _pick_batch_tile(B)
    grid = (pl.cdiv(B, TB),)

    # Advisory cost hint for the XLA scheduler (padded-dim flop count is fine).
    flops = 2 * B * n_layers * LANE * LANE
    bytes_accessed = (x.size + w_slab.size + b_slab.size + B * d_out) * 4

    return pl.pallas_call(
        functools.partial(_mlp_kernel, d_in=d_in, d_out=d_out),
        out_shape=jax.ShapeDtypeStruct((B, d_out), jnp.float32),
        grid=grid,
        in_specs=[
            # x tile: last dim equals the full array dim -> no lane padding needed.
            pl.BlockSpec((TB, d_in), lambda i: (i, 0)),
            # Parameter slabs: constant block index -> DMA'd once, VMEM-resident.
            pl.BlockSpec((n_layers, LANE, LANE), lambda i: (0, 0, 0)),
            pl.BlockSpec((n_layers, LANE), lambda i: (0, 0)),
        ],
        out_specs=pl.BlockSpec((TB, d_out), lambda i: (i, 0)),
        compiler_params=pltpu.CompilerParams(
            dimension_semantics=("parallel",)),   # megacore / 2-TC sharding where available
        cost_estimate=pl.CostEstimate(
            flops=flops, transcendentals=0, bytes_accessed=bytes_accessed),
    )(x, w_slab, b_slab)


def init_params(key, arch):
    """PyTorch nn.Linear-style init: U(-1/sqrt(fan_in), 1/sqrt(fan_in)) for W and b.
    W stored as (d_in, d_out) == W_torch.T so that y = x @ W + b."""
    params = []
    for i in range(len(arch) - 1):
        d_in, d_out = arch[i], arch[i + 1]
        key, kw, kb = jax.random.split(key, 3)
        bound = 1.0 / jnp.sqrt(d_in)
        w = jax.random.uniform(kw, (d_in, d_out), jnp.float32, -bound, bound)
        b = jax.random.uniform(kb, (d_out,), jnp.float32, -bound, bound)
        params.append((w, b))
    return params


def reference_forward(x, params):
    """Pure-JAX f32 reference of Net.forward."""
    h = x
    n = len(params)
    for i, (w, b) in enumerate(params):
        h = jnp.dot(h, w, preferred_element_type=jnp.float32) + b
        if i < n - 1:
            h = jnp.maximum(h, 0.0)
    return h


def _check(batch, arch, params, w_slab, b_slab, d_out, key):
    x = jax.random.normal(key, (batch, arch[0]), jnp.float32)
    out = jax.block_until_ready(net_forward(x, w_slab, b_slab, d_out))
    ref = reference_forward(x, params)
    assert out.shape == (batch, arch[-1])
    # 1e-2 tolerance covers any MXU f32-precision-mode difference between the in-kernel
    # dot and the XLA reference dot; observed error is typically << 1e-3.
    assert jnp.allclose(out, ref, atol=1e-2, rtol=1e-2), float(jnp.max(jnp.abs(out - ref)))


if __name__ == "__main__":
    # NN_ARCHITECTURE = [D0, D1, D2, D3, D4]
    NN_ARCHITECTURE = [32, 64, 64, 32, 16]

    key = jax.random.PRNGKey(0)
    kx_small, kx_big, kp = jax.random.split(key, 3)
    params = init_params(kp, NN_ARCHITECTURE)
    w_slab, b_slab, d_out = pack_params(params)

    # Small, latency-bound case: single grid step, single XLA op end to end.
    _check(8, NN_ARCHITECTURE, params, w_slab, b_slab, d_out, kx_small)
    # Larger, throughput case: exercises the multi-step grid with VMEM-resident parameters.
    _check(4096, NN_ARCHITECTURE, params, w_slab, b_slab, d_out, kx_big)

    print("KERNEL_OK")
</pallas_src>

<mosaic_0001>
module attributes {stable_mosaic.version = 11 : i64} {
  func.func @_mlp_kernel(%arg0: i32, %arg1: memref<8x32xf32, #tpu.memory_space<vmem>>, %arg2: memref<4x128x128xf32, #tpu.memory_space<vmem>>, %arg3: memref<4x128xf32, #tpu.memory_space<vmem>>, %arg4: memref<8x16xf32, #tpu.memory_space<vmem>>) attributes {dimension_semantics = [#tpu.dimension_semantics<parallel>], iteration_bounds = array<i64: 1>, scalar_prefetch = 0 : i64, scratch_operands = 0 : i64, tpu.core_type = #tpu.core_type<tc>, window_params = [{transform_indices = @transform_0, window_bounds = array<i64: 8, 32>}, {pipeline_mode = #tpu.pipeline_mode<synchronous>, transform_indices = @transform_1, window_bounds = array<i64: 4, 128, 128>}, {pipeline_mode = #tpu.pipeline_mode<synchronous>, transform_indices = @transform_2, window_bounds = array<i64: 4, 128>}, {transform_indices = @transform_3, window_bounds = array<i64: 8, 16>}]} {
    %c0 = arith.constant 0 : index
    %c0_0 = arith.constant 0 : index
    %0 = vector.load %arg1[%c0, %c0_0] : memref<8x32xf32, #tpu.memory_space<vmem>>, vector<8x32xf32>
    %c0_1 = arith.constant 0 : index
    %c0_2 = arith.constant 0 : index
    %c0_3 = arith.constant 0 : index
    %1 = vector.load %arg2[%c0_1, %c0_2, %c0_3] : memref<4x128x128xf32, #tpu.memory_space<vmem>>, vector<1x128x128xf32>
    %2 = vector.shape_cast %1 : vector<1x128x128xf32> to vector<128x128xf32>
    %3 = vector.extract_strided_slice %2 {offsets = [0, 0], sizes = [32, 128], strides = [1, 1]} : vector<128x128xf32> to vector<32x128xf32>
    %cst = arith.constant dense<0.000000e+00> : vector<8x128xf32>
    %4 = tpu.matmul %0, %3, %cst {dimension_numbers = #tpu.dot_dimension_numbers<[1], [0], [0], [1], [0, 0, 1, 1], [], []>} : vector<8x32xf32>, vector<32x128xf32>, vector<8x128xf32> -> vector<8x128xf32>
    %c0_4 = arith.constant 0 : index
    %c0_5 = arith.constant 0 : index
    %5 = vector.load %arg3[%c0_4, %c0_5] : memref<4x128xf32, #tpu.memory_space<vmem>>, vector<1x128xf32>
    %6 = vector.broadcast %5 : vector<1x128xf32> to vector<8x128xf32>
    %7 = arith.addf %4, %6 : vector<8x128xf32>
    %cst_6 = arith.constant 0.000000e+00 : f32
    %8 = vector.broadcast %cst_6 : f32 to vector<8x128xf32>
    %9 = arith.maximumf %7, %8 : vector<8x128xf32>
    %c1 = arith.constant 1 : index
    %c0_7 = arith.constant 0 : index
    %c0_8 = arith.constant 0 : index
    %10 = vector.load %arg2[%c1, %c0_7, %c0_8] : memref<4x128x128xf32, #tpu.memory_space<vmem>>, vector<1x128x128xf32>
    %11 = vector.shape_cast %10 : vector<1x128x128xf32> to vector<128x128xf32>
    %cst_9 = arith.constant dense<0.000000e+00> : vector<8x128xf32>
    %12 = tpu.matmul %9, %11, %cst_9 {dimension_numbers = #tpu.dot_dimension_numbers<[1], [0], [0], [1], [0, 0, 1, 1], [], []>} : vector<8x128xf32>, vector<128x128xf32>, vector<8x128xf32> -> vector<8x128xf32>
    %c1_10 = arith.constant 1 : index
    %c0_11 = arith.constant 0 : index
    %13 = vector.load %arg3[%c1_10, %c0_11] : memref<4x128xf32, #tpu.memory_space<vmem>>, vector<1x128xf32>
    %14 = vector.broadcast %13 : vector<1x128xf32> to vector<8x128xf32>
    %15 = arith.addf %12, %14 : vector<8x128xf32>
    %cst_12 = arith.constant 0.000000e+00 : f32
    %16 = vector.broadcast %cst_12 : f32 to vector<8x128xf32>
    %17 = arith.maximumf %15, %16 : vector<8x128xf32>
    %c2 = arith.constant 2 : index
    %c0_13 = arith.constant 0 : index
    %c0_14 = arith.constant 0 : index
    %18 = vector.load %arg2[%c2, %c0_13, %c0_14] : memref<4x128x128xf32, #tpu.memory_space<vmem>>, vector<1x128x128xf32>
    %19 = vector.shape_cast %18 : vector<1x128x128xf32> to vector<128x128xf32>
    %cst_15 = arith.constant dense<0.000000e+00> : vector<8x128xf32>
    %20 = tpu.matmul %17, %19, %cst_15 {dimension_numbers = #tpu.dot_dimension_numbers<[1], [0], [0], [1], [0, 0, 1, 1], [], []>} : vector<8x128xf32>, vector<128x128xf32>, vector<8x128xf32> -> vector<8x128xf32>
    %c2_16 = arith.constant 2 : index
    %c0_17 = arith.constant 0 : index
    %21 = vector.load %arg3[%c2_16, %c0_17] : memref<4x128xf32, #tpu.memory_space<vmem>>, vector<1x128xf32>
    %22 = vector.broadcast %21 : vector<1x128xf32> to vector<8x128xf32>
    %23 = arith.addf %20, %22 : vector<8x128xf32>
    %cst_18 = arith.constant 0.000000e+00 : f32
    %24 = vector.broadcast %cst_18 : f32 to vector<8x128xf32>
    %25 = arith.maximumf %23, %24 : vector<8x128xf32>
    %c3 = arith.constant 3 : index
    %c0_19 = arith.constant 0 : index
    %c0_20 = arith.constant 0 : index
    %26 = vector.load %arg2[%c3, %c0_19, %c0_20] : memref<4x128x128xf32, #tpu.memory_space<vmem>>, vector<1x128x128xf32>
    %27 = vector.shape_cast %26 : vector<1x128x128xf32> to vector<128x128xf32>
    %cst_21 = arith.constant dense<0.000000e+00> : vector<8x128xf32>
    %28 = tpu.matmul %25, %27, %cst_21 {dimension_numbers = #tpu.dot_dimension_numbers<[1], [0], [0], [1], [0, 0, 1, 1], [], []>} : vector<8x128xf32>, vector<128x128xf32>, vector<8x128xf32> -> vector<8x128xf32>
    %c3_22 = arith.constant 3 : index
    %c0_23 = arith.constant 0 : index
    %29 = vector.load %arg3[%c3_22, %c0_23] : memref<4x128xf32, #tpu.memory_space<vmem>>, vector<1x128xf32>
    %30 = vector.broadcast %29 : vector<1x128xf32> to vector<8x128xf32>
    %31 = arith.addf %28, %30 : vector<8x128xf32>
    %32 = vector.extract_strided_slice %31 {offsets = [0, 0], sizes = [8, 16], strides = [1, 1]} : vector<8x128xf32> to vector<8x16xf32>
    %c0_24 = arith.constant 0 : index
    %c0_25 = arith.constant 0 : index
    %33 = vector.load %arg4[%c0_24, %c0_25] : memref<8x16xf32, #tpu.memory_space<vmem>>, vector<8x16xf32>
    tpu.vector_store %arg4[%c0_24, %c0_25], %32 {strides = array<i32>} : memref<8x16xf32, #tpu.memory_space<vmem>>, vector<8x16xf32>,
    return
  }
  func.func @transform_0(%arg0: i32) -> (i32, i32) {
    %c0_i32 = arith.constant 0 : i32
    %c0_i32_0 = arith.constant 0 : i32
    return %arg0, %c0_i32 : i32, i32
  }
  func.func @transform_1(%arg0: i32) -> (i32, i32, i32) {
    %c0_i32 = arith.constant 0 : i32
    %c0_i32_0 = arith.constant 0 : i32
    %c0_i32_1 = arith.constant 0 : i32
    %c0_i32_2 = arith.constant 0 : i32
    return %c0_i32, %c0_i32_0, %c0_i32_1 : i32, i32, i32
  }
  func.func @transform_2(%arg0: i32) -> (i32, i32) {
    %c0_i32 = arith.constant 0 : i32
    %c0_i32_0 = arith.constant 0 : i32
    %c0_i32_1 = arith.constant 0 : i32
    return %c0_i32, %c0_i32_0 : i32, i32
  }
  func.func @transform_3(%arg0: i32) -> (i32, i32) {
    %c0_i32 = arith.constant 0 : i32
    %c0_i32_0 = arith.constant 0 : i32
    return %arg0, %c0_i32 : i32, i32
  }
}

</mosaic_0001>

<llo_original>
// kernel: net_forward.1
$region0: #{net_forward.1}
  #allocation0 [shape = 'u32[]', space=smem, size = 0x4, offset = 0x4, fixed_abs, tag = 'smem constant byte address 0x4 - core index']
  #allocation1 [shape = 'u32[144,128]{1,0:T(1,128)}', space=vmem, size = 0x12000, scoped, tag = 'internal scratch']
  %s0 = inlined_call_operand.hbm [shape: f32[8,32], index: 0, kind: input, shape index: {}]
  %s1 = inlined_call_operand.hbm [shape: f32[4,128,128], index: 1, kind: input, shape index: {}]
  %s2 = inlined_call_operand.vmem [shape: f32[4,128], index: 2, kind: input, shape index: {}]
  %s3 = inlined_call_operand.hbm [shape: f32[8,16], index: 3, kind: output, shape index: {}]
  %s4 = sld [smem:[#allocation0]]
  $region30: #{net_forward.1} parent=0
    _
  %s6 = ssub.s32 1, %s4
  %s7 = scalar_select 0, %s6, %s4
  $region1: #{net_forward.1} parent=0
    #allocation2 [shape = 'u8[4096]{0}', space=vmem, size = 0x1000, scoped, tag = 'input window, operand 0, single buffered']
    #allocation3 [shape = 's32[1]{0}', space=sflag, size = 0x4, scoped, tag = 'scoped memory for net_forward.1']
    #allocation4 [shape = 's32[1]{0}', space=sflag, size = 0x4, scoped, tag = 'scoped memory for net_forward.1']
    #allocation5 [shape = 'u8[262144]{0}', space=vmem, size = 0x40000, scoped, tag = 'input window, operand 1, single buffered']
    #allocation6 [shape = 's32[1]{0}', space=sflag, size = 0x4, scoped, tag = 'scoped memory for net_forward.1']
    #allocation7 [shape = 'u8[4096]{0}', space=vmem, size = 0x1000, scoped, tag = 'output window, operand 0, single buffered']
    %8 = vsyncpa [#allocation3], 0
    %9 = vsyncpa [#allocation6], 0
    %10 = vsyncpa [#allocation4], 0
    // Predicated region
    $region2: #{net_forward.1} parent=1 // pred_check
      _
    $region3: #{net_forward.1} parent=1 // pred_check_branch
      %12 = sbr.rel (0) target = $region5
    $region4: #{net_forward.1} parent=1 // pred_region
      %s14 = ssub.s32 128, 128
      %15 = vsyncadd [#allocation3], %s14
      %s17 = sshll.u32 [#allocation2], 4
      %s18 = int_to_ptr.vmem [resolvable:$true] %s17
      %20 = dma.hbm_to_vmem [thread:$0]  %s0, 128, %s18, [#allocation3]
    $region5: #{net_forward.1} parent=1 // pred_fallthru
      _
    // Predicated region
    $region6: #{net_forward.1} parent=1 // pred_check
      _
    $region7: #{net_forward.1} parent=1 // pred_check_branch
      %22 = sbr.rel (0) target = $region9
    $region8: #{net_forward.1} parent=1 // pred_region
      %s24 = ssub.s32 8192, 8192
      %25 = vsyncadd [#allocation6], %s24
      %s26 = sshll.u32 [#allocation5], 4
      %s27 = int_to_ptr.vmem [resolvable:$true] %s26
      %32 = dma.hbm_to_vmem [thread:$0]  %s1, 8192, %s27, [#allocation6], 128, 128, 8
    $region9: #{net_forward.1} parent=1 // pred_fallthru
      _
    // Predicated region
    $region10: #{net_forward.1} parent=1 // pred_check
      _
    $region11: #{net_forward.1} parent=1 // pred_check_branch
      %34 = sbr.rel (0) target = $region13
    $region12: #{net_forward.1} parent=1 // pred_region
      _
    $region13: #{net_forward.1} parent=1 // pred_fallthru
      _
    // Predicated region
    $region14: #{net_forward.1} parent=1 // pred_check
      _
    $region15: #{net_forward.1} parent=1 // pred_check_branch
      %36 = sbr.rel (0) target = $region17
    $region16: #{net_forward.1} parent=1 // pred_region
      %37 = dma.done [#allocation3], 128
    $region17: #{net_forward.1} parent=1 // pred_fallthru
      _
    // Predicated region
    $region18: #{net_forward.1} parent=1 // pred_check
      _
    $region19: #{net_forward.1} parent=1 // pred_check_branch
      %39 = sbr.rel (0) target = $region21
    $region20: #{net_forward.1} parent=1 // pred_region
      %40 = dma.done [#allocation6], 8192
    $region21: #{net_forward.1} parent=1 // pred_fallthru
      _
    %v41 = vld [vmem:[#allocation2] sm:$0xff]
    %v42 = vld [vmem:[#allocation5] sm:$0xff]
    %v43 = vld [vmem:[#allocation5 + $0x8] sm:$0xff]
    %v44 = vld [vmem:[#allocation5 + $0x10] sm:$0xff]
    %v45 = vld [vmem:[#allocation5 + $0x18] sm:$0xff]
    %v46 = vld [vmem:[%s2] sm:$0x1]
    %v47 = vlaneseq
    %v48 = vshrl.u32 %v47, 7
    %v49 = vsub.s32 0, %v48
    %v50 = vrot.slane %v46, %v49
    %vm51 = vcmask 261120
    %v53 = vsel %vm51, %v41, 0
    %55 = vmatprep.subr.mxu0 0.0
    %56 = vmatpush1.msra.mxu0 %v42
    %57 = vmatprep.subr.mxu0 0.0
    %58 = vmatpush1.msra.mxu0 %v43
    %59 = vmatprep.subr.mxu0 0.0
    %60 = vmatpush1.msra.mxu0 %v44
    %61 = vmatprep.subr.mxu0 0.0
    %62 = vmatpush1.msra.mxu0 %v45
    %63 = vmatprep.subr.mxu0 0.0
    %64 = vmatpush1.msra.mxu0 0.0
    %65 = vmatprep.subr.mxu0 0.0
    %66 = vmatpush1.msra.mxu0 0.0
    %67 = vmatprep.subr.mxu0 0.0
    %68 = vmatpush1.msra.mxu0 0.0
    %69 = vmatprep.subr.mxu0 0.0
    %70 = vmatpush1.msra.mxu0 0.0
    %71 = vmatprep.subr.mxu0 0.0
    %72 = vmatpush1.msra.mxu0 0.0
    %73 = vmatprep.subr.mxu0 0.0
    %74 = vmatpush1.msra.mxu0 0.0
    %75 = vmatprep.subr.mxu0 0.0
    %76 = vmatpush1.msra.mxu0 0.0
    %77 = vmatprep.subr.mxu0 0.0
    %78 = vmatpush1.msra.mxu0 0.0
    %79 = vmatprep.subr.mxu0 0.0
    %80 = vmatpush1.msra.mxu0 0.0
    %81 = vmatprep.subr.mxu0 0.0
    %82 = vmatpush1.msra.mxu0 0.0
    %83 = vmatprep.subr.mxu0 0.0
    %84 = vmatpush1.msra.mxu0 0.0
    %85 = vmatprep.subr.mxu0 0.0
    %86 = vmatpush1.msra.mxu0 0.0
    %87 = vmatprep.subr.mxu0 0.0
    %88 = vmatpush1.msra.mxu0 0.0
    %89 = vmatprep.subr.mxu0 0.0
    %90 = vmatpush1.msra.mxu0 0.0
    %91 = vmatprep.subr.mxu0 0.0
    %92 = vmatpush1.msra.mxu0 0.0
    %93 = vmatprep.subr.mxu0 0.0
    %94 = vmatpush1.msra.mxu0 0.0
    %95 = vmatprep.subr.mxu0 0.0
    %96 = vmatpush1.msra.mxu0 0.0
    %97 = vmatprep.subr.mxu0 0.0
    %98 = vmatpush1.msra.mxu0 0.0
    %99 = vmatprep.subr.mxu0 0.0
    %100 = vmatpush1.msra.mxu0 0.0
    %101 = vmatprep.subr.mxu0 0.0
    %102 = vmatpush1.msra.mxu0 0.0
    %103 = vmatprep.subr.mxu0 0.0
    %104 = vmatpush1.msra.mxu0 0.0
    %105 = vmatprep.subr.mxu0 0.0
    %106 = vmatpush1.msra.mxu0 0.0
    %107 = vmatprep.subr.mxu0 0.0
    %108 = vmatpush1.msra.mxu0 0.0
    %109 = vmatprep.subr.mxu0 0.0
    %110 = vmatpush1.msra.mxu0 0.0
    %111 = vmatprep.subr.mxu0 0.0
    %112 = vmatpush1.msra.mxu0 0.0
    %113 = vmatprep.subr.mxu0 0.0
    %114 = vmatpush1.msra.mxu0 0.0
    %115 = vmatprep.subr.mxu0 0.0
    %116 = vmatpush1.msra.mxu0 0.0
    %117 = vmatprep.subr.mxu0 0.0
    %118 = vmatpush1.msra.mxu0 0.0
    %119 = vmatprep.mubr.f32.mxu0 0.0
    %120 = vmatmul.mubr.f32.gmra.mrb[0].mxu0 %v53
    %v121 = vpop.f32.mrb[0].mxu0
    %v122 = vadd.f32 %v50, %v121
    %v123 = vpop.f32.mrb[0].mxu0
    %124 = vdwg.mxu0
    %v125 = vmax.f32 %v122, 0.0
    %s126 = scalar_lea.vmem [#allocation5], 128
    %v127 = vld [vmem:[%s126] sm:$0xff]
    %v128 = vld [vmem:[%s126 + $0x8] sm:$0xff]
    %v129 = vld [vmem:[%s126 + $0x10] sm:$0xff]
    %v130 = vld [vmem:[%s126 + $0x18] sm:$0xff]
    %v131 = vld [vmem:[%s126 + $0x20] sm:$0xff]
    %v132 = vld [vmem:[%s126 + $0x28] sm:$0xff]
    %v133 = vld [vmem:[%s126 + $0x30] sm:$0xff]
    %v134 = vld [vmem:[%s126 + $0x38] sm:$0xff]
    %v135 = vld [vmem:[%s126 + $0x40] sm:$0xff]
    %v136 = vld [vmem:[%s126 + $0x48] sm:$0xff]
    %v137 = vld [vmem:[%s126 + $0x50] sm:$0xff]
    %v138 = vld [vmem:[%s126 + $0x58] sm:$0xff]
    %v139 = vld [vmem:[%s126 + $0x60] sm:$0xff]
    %v140 = vld [vmem:[%s126 + $0x68] sm:$0xff]
    %v141 = vld [vmem:[%s126 + $0x70] sm:$0xff]
    %v142 = vld [vmem:[%s126 + $0x78] sm:$0xff]
    %v143 = vld [vmem:[%s2 + $0x1] sm:$0x1]
    %v144 = vlaneseq
    %v145 = vshrl.u32 %v144, 7
    %v146 = vsub.s32 0, %v145
    %v147 = vrot.slane %v143, %v146
    %148 = vmatprep.subr.mxu0 0.0
    %149 = vmatpush1.msra.mxu0 %v127
    %150 = vmatprep.subr.mxu0 0.0
    %151 = vmatpush1.msra.mxu0 %v128
    %152 = vmatprep.subr.mxu0 0.0
    %153 = vmatpush1.msra.mxu0 %v129
    %154 = vmatprep.subr.mxu0 0.0
    %155 = vmatpush1.msra.mxu0 %v130
    %156 = vmatprep.subr.mxu0 0.0
    %157 = vmatpush1.msra.mxu0 %v131
    %158 = vmatprep.subr.mxu0 0.0
    %159 = vmatpush1.msra.mxu0 %v132
    %160 = vmatprep.subr.mxu0 0.0
    %161 = vmatpush1.msra.mxu0 %v133
    %162 = vmatprep.subr.mxu0 0.0
    %163 = vmatpush1.msra.mxu0 %v134
    %164 = vmatprep.subr.mxu0 0.0
    %165 = vmatpush1.msra.mxu0 %v135
    %166 = vmatprep.subr.mxu0 0.0
    %167 = vmatpush1.msra.mxu0 %v136
    %168 = vmatprep.subr.mxu0 0.0
    %169 = vmatpush1.msra.mxu0 %v137
    %170 = vmatprep.subr.mxu0 0.0
    %171 = vmatpush1.msra.mxu0 %v138
    %172 = vmatprep.subr.mxu0 0.0
    %173 = vmatpush1.msra.mxu0 %v139
    %174 = vmatprep.subr.mxu0 0.0
    %175 = vmatpush1.msra.mxu0 %v140
    %176 = vmatprep.subr.mxu0 0.0
    %177 = vmatpush1.msra.mxu0 %v141
    %178 = vmatprep.subr.mxu0 0.0
    %179 = vmatpush1.msra.mxu0 %v142
    %180 = vmatprep.subr.mxu0 0.0
    %181 = vmatpush1.msra.mxu0 0.0
    %182 = vmatprep.subr.mxu0 0.0
    %183 = vmatpush1.msra.mxu0 0.0
    %184 = vmatprep.subr.mxu0 0.0
    %185 = vmatpush1.msra.mxu0 0.0
    %186 = vmatprep.subr.mxu0 0.0
    %187 = vmatpush1.msra.mxu0 0.0
    %188 = vmatprep.subr.mxu0 0.0
    %189 = vmatpush1.msra.mxu0 0.0
    %190 = vmatprep.subr.mxu0 0.0
    %191 = vmatpush1.msra.mxu0 0.0
    %192 = vmatprep.subr.mxu0 0.0
    %193 = vmatpush1.msra.mxu0 0.0
    %194 = vmatprep.subr.mxu0 0.0
    %195 = vmatpush1.msra.mxu0 0.0
    %196 = vmatprep.subr.mxu0 0.0
    %197 = vmatpush1.msra.mxu0 0.0
    %198 = vmatprep.subr.mxu0 0.0
    %199 = vmatpush1.msra.mxu0 0.0
    %200 = vmatprep.subr.mxu0 0.0
    %201 = vmatpush1.msra.mxu0 0.0
    %202 = vmatprep.subr.mxu0 0.0
    %203 = vmatpush1.msra.mxu0 0.0
    %204 = vmatprep.subr.mxu0 0.0
    %205 = vmatpush1.msra.mxu0 0.0
    %206 = vmatprep.subr.mxu0 0.0
    %207 = vmatpush1.msra.mxu0 0.0
    %208 = vmatprep.subr.mxu0 0.0
    %209 = vmatpush1.msra.mxu0 0.0
    %210 = vmatprep.subr.mxu0 0.0
    %211 = vmatpush1.msra.mxu0 0.0
    %212 = vmatprep.mubr.f32.mxu0 0.0
    %213 = vmatmul.mubr.f32.gmra.mrb[0].mxu0 %v125
    %v214 = vpop.f32.mrb[0].mxu0
    %v215 = vadd.f32 %v147, %v214
    %v216 = vpop.f32.mrb[0].mxu0
    %217 = vdwg.mxu0
    %v218 = vmax.f32 %v215, 0.0
    %s219 = scalar_lea.vmem [#allocation5], 256
    %v220 = vld [vmem:[%s219] sm:$0xff]
    %v221 = vld [vmem:[%s219 + $0x8] sm:$0xff]
    %v222 = vld [vmem:[%s219 + $0x10] sm:$0xff]
    %v223 = vld [vmem:[%s219 + $0x18] sm:$0xff]
    %v224 = vld [vmem:[%s219 + $0x20] sm:$0xff]
    %v225 = vld [vmem:[%s219 + $0x28] sm:$0xff]
    %v226 = vld [vmem:[%s219 + $0x30] sm:$0xff]
    %v227 = vld [vmem:[%s219 + $0x38] sm:$0xff]
    %v228 = vld [vmem:[%s219 + $0x40] sm:$0xff]
    %v229 = vld [vmem:[%s219 + $0x48] sm:$0xff]
    %v230 = vld [vmem:[%s219 + $0x50] sm:$0xff]
    %v231 = vld [vmem:[%s219 + $0x58] sm:$0xff]
    %v232 = vld [vmem:[%s219 + $0x60] sm:$0xff]
    %v233 = vld [vmem:[%s219 + $0x68] sm:$0xff]
    %v234 = vld [vmem:[%s219 + $0x70] sm:$0xff]
    %v235 = vld [vmem:[%s219 + $0x78] sm:$0xff]
    %v236 = vld [vmem:[%s2 + $0x2] sm:$0x1]
    %v237 = vlaneseq
    %v238 = vshrl.u32 %v237, 7
    %v239 = vsub.s32 0, %v238
    %v240 = vrot.slane %v236, %v239
    %241 = vmatprep.subr.mxu0 0.0
    %242 = vmatpush1.msra.mxu0 %v220
    %243 = vmatprep.subr.mxu0 0.0
    %244 = vmatpush1.msra.mxu0 %v221
    %245 = vmatprep.subr.mxu0 0.0
    %246 = vmatpush1.msra.mxu0 %v222
    %247 = vmatprep.subr.mxu0 0.0
    %248 = vmatpush1.msra.mxu0 %v223
    %249 = vmatprep.subr.mxu0 0.0
    %250 = vmatpush1.msra.mxu0 %v224
    %251 = vmatprep.subr.mxu0 0.0
    %252 = vmatpush1.msra.mxu0 %v225
    %253 = vmatprep.subr.mxu0 0.0
    %254 = vmatpush1.msra.mxu0 %v226
    %255 = vmatprep.subr.mxu0 0.0
    %256 = vmatpush1.msra.mxu0 %v227
    %257 = vmatprep.subr.mxu0 0.0
    %258 = vmatpush1.msra.mxu0 %v228
    %259 = vmatprep.subr.mxu0 0.0
    %260 = vmatpush1.msra.mxu0 %v229
    %261 = vmatprep.subr.mxu0 0.0
    %262 = vmatpush1.msra.mxu0 %v230
    %263 = vmatprep.subr.mxu0 0.0
    %264 = vmatpush1.msra.mxu0 %v231
    %265 = vmatprep.subr.mxu0 0.0
    %266 = vmatpush1.msra.mxu0 %v232
    %267 = vmatprep.subr.mxu0 0.0
    %268 = vmatpush1.msra.mxu0 %v233
    %269 = vmatprep.subr.mxu0 0.0
    %270 = vmatpush1.msra.mxu0 %v234
    %271 = vmatprep.subr.mxu0 0.0
    %272 = vmatpush1.msra.mxu0 %v235
    %273 = vmatprep.subr.mxu0 0.0
    %274 = vmatpush1.msra.mxu0 0.0
    %275 = vmatprep.subr.mxu0 0.0
    %276 = vmatpush1.msra.mxu0 0.0
    %277 = vmatprep.subr.mxu0 0.0
    %278 = vmatpush1.msra.mxu0 0.0
    %279 = vmatprep.subr.mxu0 0.0
    %280 = vmatpush1.msra.mxu0 0.0
    %281 = vmatprep.subr.mxu0 0.0
    %282 = vmatpush1.msra.mxu0 0.0
    %283 = vmatprep.subr.mxu0 0.0
    %284 = vmatpush1.msra.mxu0 0.0
    %285 = vmatprep.subr.mxu0 0.0
    %286 = vmatpush1.msra.mxu0 0.0
    %287 = vmatprep.subr.mxu0 0.0
    %288 = vmatpush1.msra.mxu0 0.0
    %289 = vmatprep.subr.mxu0 0.0
    %290 = vmatpush1.msra.mxu0 0.0
    %291 = vmatprep.subr.mxu0 0.0
    %292 = vmatpush1.msra.mxu0 0.0
    %293 = vmatprep.subr.mxu0 0.0
    %294 = vmatpush1.msra.mxu0 0.0
    %295 = vmatprep.subr.mxu0 0.0
    %296 = vmatpush1.msra.mxu0 0.0
    %297 = vmatprep.subr.mxu0 0.0
    %298 = vmatpush1.msra.mxu0 0.0
    %299 = vmatprep.subr.mxu0 0.0
    %300 = vmatpush1.msra.mxu0 0.0
    %301 = vmatprep.subr.mxu0 0.0
    %302 = vmatpush1.msra.mxu0 0.0
    %303 = vmatprep.subr.mxu0 0.0
    %304 = vmatpush1.msra.mxu0 0.0
    %305 = vmatprep.mubr.f32.mxu0 0.0
    %306 = vmatmul.mubr.f32.gmra.mrb[0].mxu0 %v218
    %v307 = vpop.f32.mrb[0].mxu0
    %v308 = vadd.f32 %v240, %v307
    %v309 = vpop.f32.mrb[0].mxu0
    %310 = vdwg.mxu0
    %v311 = vmax.f32 %v308, 0.0
    %s312 = scalar_lea.vmem [#allocation5], 384
    %v313 = vld [vmem:[%s312] sm:$0xff]
    %v314 = vld [vmem:[%s312 + $0x8] sm:$0xff]
    %v315 = vld [vmem:[%s312 + $0x10] sm:$0xff]
    %v316 = vld [vmem:[%s312 + $0x18] sm:$0xff]
    %v317 = vld [vmem:[%s312 + $0x20] sm:$0xff]
    %v318 = vld [vmem:[%s312 + $0x28] sm:$0xff]
    %v319 = vld [vmem:[%s312 + $0x30] sm:$0xff]
    %v320 = vld [vmem:[%s312 + $0x38] sm:$0xff]
    %v321 = vld [vmem:[%s312 + $0x40] sm:$0xff]
    %v322 = vld [vmem:[%s312 + $0x48] sm:$0xff]
    %v323 = vld [vmem:[%s312 + $0x50] sm:$0xff]
    %v324 = vld [vmem:[%s312 + $0x58] sm:$0xff]
    %v325 = vld [vmem:[%s312 + $0x60] sm:$0xff]
    %v326 = vld [vmem:[%s312 + $0x68] sm:$0xff]
    %v327 = vld [vmem:[%s312 + $0x70] sm:$0xff]
    %v328 = vld [vmem:[%s312 + $0x78] sm:$0xff]
    %v329 = vld [vmem:[%s2 + $0x3] sm:$0x1]
    %v330 = vlaneseq
    %v331 = vshrl.u32 %v330, 7
    %v332 = vsub.s32 0, %v331
    %v333 = vrot.slane %v329, %v332
    %334 = vmatprep.subr.mxu0 0.0
    %335 = vmatpush1.msra.mxu0 %v313
    %336 = vmatprep.subr.mxu0 0.0
    %337 = vmatpush1.msra.mxu0 %v314
    %338 = vmatprep.subr.mxu0 0.0
    %339 = vmatpush1.msra.mxu0 %v315
    %340 = vmatprep.subr.mxu0 0.0
    %341 = vmatpush1.msra.mxu0 %v316
    %342 = vmatprep.subr.mxu0 0.0
    %343 = vmatpush1.msra.mxu0 %v317
    %344 = vmatprep.subr.mxu0 0.0
    %345 = vmatpush1.msra.mxu0 %v318
    %346 = vmatprep.subr.mxu0 0.0
    %347 = vmatpush1.msra.mxu0 %v319
    %348 = vmatprep.subr.mxu0 0.0
    %349 = vmatpush1.msra.mxu0 %v320
    %350 = vmatprep.subr.mxu0 0.0
    %351 = vmatpush1.msra.mxu0 %v321
    %352 = vmatprep.subr.mxu0 0.0
    %353 = vmatpush1.msra.mxu0 %v322
    %354 = vmatprep.subr.mxu0 0.0
    %355 = vmatpush1.msra.mxu0 %v323
    %356 = vmatprep.subr.mxu0 0.0
    %357 = vmatpush1.msra.mxu0 %v324
    %358 = vmatprep.subr.mxu0 0.0
    %359 = vmatpush1.msra.mxu0 %v325
    %360 = vmatprep.subr.mxu0 0.0
    %361 = vmatpush1.msra.mxu0 %v326
    %362 = vmatprep.subr.mxu0 0.0
    %363 = vmatpush1.msra.mxu0 %v327
    %364 = vmatprep.subr.mxu0 0.0
    %365 = vmatpush1.msra.mxu0 %v328
    %366 = vmatprep.subr.mxu0 0.0
    %367 = vmatpush1.msra.mxu0 0.0
    %368 = vmatprep.subr.mxu0 0.0
    %369 = vmatpush1.msra.mxu0 0.0
    %370 = vmatprep.subr.mxu0 0.0
    %371 = vmatpush1.msra.mxu0 0.0
    %372 = vmatprep.subr.mxu0 0.0
    %373 = vmatpush1.msra.mxu0 0.0
    %374 = vmatprep.subr.mxu0 0.0
    %375 = vmatpush1.msra.mxu0 0.0
    %376 = vmatprep.subr.mxu0 0.0
    %377 = vmatpush1.msra.mxu0 0.0
    %378 = vmatprep.subr.mxu0 0.0
    %379 = vmatpush1.msra.mxu0 0.0
    %380 = vmatprep.subr.mxu0 0.0
    %381 = vmatpush1.msra.mxu0 0.0
    %382 = vmatprep.subr.mxu0 0.0
    %383 = vmatpush1.msra.mxu0 0.0
    %384 = vmatprep.subr.mxu0 0.0
    %385 = vmatpush1.msra.mxu0 0.0
    %386 = vmatprep.subr.mxu0 0.0
    %387 = vmatpush1.msra.mxu0 0.0
    %388 = vmatprep.subr.mxu0 0.0
    %389 = vmatpush1.msra.mxu0 0.0
    %390 = vmatprep.subr.mxu0 0.0
    %391 = vmatpush1.msra.mxu0 0.0
    %392 = vmatprep.subr.mxu0 0.0
    %393 = vmatpush1.msra.mxu0 0.0
    %394 = vmatprep.subr.mxu0 0.0
    %395 = vmatpush1.msra.mxu0 0.0
    %396 = vmatprep.subr.mxu0 0.0
    %397 = vmatpush1.msra.mxu0 0.0
    %398 = vmatprep.mubr.f32.mxu0 0.0
    %399 = vmatmul.mubr.f32.gmra.mrb[0].mxu0 %v311
    %v400 = vpop.f32.mrb[0].mxu0
    %v401 = vadd.f32 %v333, %v400
    %v402 = vpop.f32.mrb[0].mxu0
    %403 = vdwg.mxu0
    %vm404 = vcmask 130048
    %405 = vst.msk [vmem:[#allocation7] sm:$0xff] %vm404, %v401
    // Predicated region
    $region22: #{net_forward.1} parent=1 // pred_check
      _
    $region23: #{net_forward.1} parent=1 // pred_check_branch
      %407 = sbr.rel (0) target = $region25
    $region24: #{net_forward.1} parent=1 // pred_region
      %s409 = ssub.s32 128, 128
      %410 = vsyncadd [#allocation4], %s409
      %s412 = sshll.u32 [#allocation7], 4
      %s413 = int_to_ptr.vmem [resolvable:$true] %s412
      %415 = dma.vmem_to_hbm [thread:$0]  %s413, 128, %s3, [#allocation4]
    $region25: #{net_forward.1} parent=1 // pred_fallthru
      _
    // Predicated region
    $region26: #{net_forward.1} parent=1 // pred_check
      _
    $region27: #{net_forward.1} parent=1 // pred_check_branch
      %417 = sbr.rel (0) target = $region29
    $region28: #{net_forward.1} parent=1 // pred_region
      %418 = dma.done [#allocation4], 128
    $region29: #{net_forward.1} parent=1 // pred_fallthru
      _
    %419 = vsyncpa [#allocation3], 1
    %420 = vsyncpa [#allocation6], 1
    %421 = vsyncpa [#allocation4], 1

</llo_original>
